<compile_context>
chip_gen: v6e
topology: v6e:2x2x1
jax: 0.10.0
libtpu: 0.0.40
codegen_flags: <defaults>
</compile_context>

<pallas_src>
import functools

import jax
import jax.numpy as jnp
from jax.experimental import pallas as pl
from jax.experimental.pallas import tpu as pltpu


def _phosc_loss_kernel(yp_ref, tp_ref, yc_ref, tc_ref, tpc_ref, sim_ref,
                       out_ref, acc_ref, *,
                       n_total, d_phoc, tn, phos_w, phoc_w, cos_w):
    i = pl.program_id(0)

    @pl.when(i == 0)
    def _init():
        acc_ref[0] = jnp.float32(0.0)

    f32 = jnp.float32
    yp = yp_ref[...].astype(f32)             # (tn, Dphos)  y['phos']
    tp = tp_ref[...].astype(f32)             # (tn, Dphos)  targets['phos']
    yc = yc_ref[...].astype(f32)             # (tn, Dphoc)  y['phoc'] logits
    tc = tc_ref[...].astype(f32)             # (tn, Dphoc)  targets['phoc'] soft labels
    tpc_c = tpc_ref[:, :d_phoc].astype(f32)  # (tn, Dphoc)  targets['phosc'][:, :Dphoc]
    tpc_s = tpc_ref[:, d_phoc:].astype(f32)  # (tn, Dphos)  targets['phosc'][:, Dphoc:]
    sim = sim_ref[...].astype(f32)           # (tn, 1)      targets['sim'] (+1 / -1)

    # Mask out-of-range rows of a ragged final tile.  Static Python condition:
    # no masking code is emitted when the tile divides the batch.
    if n_total % tn != 0:
        row = i * tn + jax.lax.broadcasted_iota(jnp.int32, (tn, 1), 0)
        valid = row < n_total
        yp = jnp.where(valid, yp, 0.0)
        tp = jnp.where(valid, tp, 0.0)
        yc = jnp.where(valid, yc, 0.0)
        tc = jnp.where(valid, tc, 0.0)
        tpc_c = jnp.where(valid, tpc_c, 0.0)
        tpc_s = jnp.where(valid, tpc_s, 0.0)
        sim = jnp.where(valid, sim, 0.0)

    # ---- phos: sum of squared error over this tile ----
    diff = yp - tp
    sq_sum = jnp.sum(diff * diff)

    # ---- phoc: cross entropy with probability targets (no logp tile) ----
    m = jnp.max(yc, axis=1, keepdims=True)
    z = yc - m
    lse = jnp.log(jnp.sum(jnp.exp(z), axis=1, keepdims=True))
    tc_rowsum = jnp.sum(tc, axis=1, keepdims=True)
    ce_sum = jnp.sum(lse * tc_rowsum) - jnp.sum(tc * z)

    # ---- cosine embedding loss on cat(y_phoc, y_phos) vs t_phosc ----
    dot = (jnp.sum(yc * tpc_c, axis=1, keepdims=True)
           + jnp.sum(yp * tpc_s, axis=1, keepdims=True))
    n1sq = (jnp.sum(yc * yc, axis=1, keepdims=True)
            + jnp.sum(yp * yp, axis=1, keepdims=True))
    n2sq = (jnp.sum(tpc_c * tpc_c, axis=1, keepdims=True)
            + jnp.sum(tpc_s * tpc_s, axis=1, keepdims=True))
    # TODO(synk): PyTorch clamps each norm separately; clamping the product is
    # identical unless one of the norms is ~0.
    cos = dot / jnp.maximum(jnp.sqrt(n1sq) * jnp.sqrt(n2sq), 1e-8)
    per_sample = jnp.where(sim > 0, 1.0 - cos, jnp.maximum(cos, 0.0))
    cos_sum = jnp.sum(per_sample)

    # Weighted contribution of this tile (denominators are static constants).
    contrib = (phos_w * sq_sum * (1.0 / float(n_total * yp.shape[1]))
               + phoc_w * ce_sum * (1.0 / float(n_total))
               + cos_w * cos_sum * (1.0 / float(n_total)))
    acc_ref[0] = acc_ref[0] + contrib

    # Only the final grid step materializes the scalar output.
    @pl.when(i == pl.num_programs(0) - 1)
    def _finalize():
        out_ref[0, 0] = acc_ref[0]


def _pick_row_tile(n, bytes_per_row, *, vmem_budget_bytes=8 * 1024 * 1024,
                   max_rows=2048):
    """Largest row tile whose double-buffered inputs fit comfortably in VMEM
    on every TPU generation (v7x has only 64 MiB physical / 32 MiB scoped)."""
    cap = min(max_rows, max(8, vmem_budget_bytes // (2 * bytes_per_row)))
    if n <= cap:
        return n                       # single row-block == full batch (always legal)
    return max(8, (cap // 8) * 8)      # multiple of 8 sublanes; last tile masked in-kernel


def phosc_cosine_loss(y, targets, *, phos_w=4.5, phoc_w=1.0, cos_w=1.0):
    """Pallas-TPU implementation of PHOSCCosineLoss.forward.

    y:       {'phos': (N, Dphos), 'phoc': (N, Dphoc) logits}
    targets: {'phos': (N, Dphos), 'phoc': (N, Dphoc) soft labels,
              'phosc': (N, Dphoc + Dphos), 'sim': (N,) in {+1, -1}}
    Inputs may be f32 or bf16; the cast to f32 happens inside the kernel.
    """
    y_phos = jnp.asarray(y['phos'])
    y_phoc = jnp.asarray(y['phoc'])
    t_phos = jnp.asarray(targets['phos'])
    t_phoc = jnp.asarray(targets['phoc'])
    t_phosc = jnp.asarray(targets['phosc'])
    # (N,) -> (N, 1) is a metadata-only reshape of a contiguous array (no HBM copy).
    sim = jnp.asarray(targets['sim']).reshape(-1, 1)

    n, d_phos = y_phos.shape
    _, d_phoc = y_phoc.shape
    assert t_phosc.shape == (n, d_phoc + d_phos)
    assert sim.shape == (n, 1)

    bytes_per_row = (y_phos.dtype.itemsize * d_phos
                     + t_phos.dtype.itemsize * d_phos
                     + y_phoc.dtype.itemsize * d_phoc
                     + t_phoc.dtype.itemsize * d_phoc
                     + t_phosc.dtype.itemsize * (d_phoc + d_phos)
                     + sim.dtype.itemsize)
    tn = _pick_row_tile(n, bytes_per_row)
    grid = (pl.cdiv(n, tn),)

    kernel = functools.partial(
        _phosc_loss_kernel,
        n_total=n, d_phoc=d_phoc, tn=tn,
        phos_w=float(phos_w), phoc_w=float(phoc_w), cos_w=float(cos_w))

    out = pl.pallas_call(
        kernel,
        out_shape=jax.ShapeDtypeStruct((1, 1), jnp.float32),
        grid=grid,
        in_specs=[
            pl.BlockSpec((tn, d_phos), lambda i: (i, 0)),           # y_phos
            pl.BlockSpec((tn, d_phos), lambda i: (i, 0)),           # t_phos
            pl.BlockSpec((tn, d_phoc), lambda i: (i, 0)),           # y_phoc
            pl.BlockSpec((tn, d_phoc), lambda i: (i, 0)),           # t_phoc
            pl.BlockSpec((tn, d_phoc + d_phos), lambda i: (i, 0)),  # t_phosc (whole)
            pl.BlockSpec((tn, 1), lambda i: (i, 0)),                # sim
        ],
        out_specs=pl.BlockSpec(memory_space=pltpu.MemorySpace.SMEM),
        scratch_shapes=[pltpu.SMEM((1,), jnp.float32)],
        compiler_params=pltpu.CompilerParams(
            dimension_semantics=("arbitrary",)),   # sequential batch reduction
    )(y_phos, t_phos, y_phoc, t_phoc, t_phosc, sim)
    return out[0, 0]


def _reference_loss(y, targets, *, phos_w=4.5, phoc_w=1.0, cos_w=1.0):
    """Pure-JAX reference mirroring the PyTorch module."""
    yp = jnp.asarray(y['phos'], jnp.float32)
    yc = jnp.asarray(y['phoc'], jnp.float32)
    tp = jnp.asarray(targets['phos'], jnp.float32)
    tc = jnp.asarray(targets['phoc'], jnp.float32)
    x2 = jnp.asarray(targets['phosc'], jnp.float32)
    sim = jnp.asarray(targets['sim'], jnp.float32)

    mse = jnp.mean((yp - tp) ** 2)
    logp = jax.nn.log_softmax(yc, axis=1)
    ce = jnp.mean(-jnp.sum(tc * logp, axis=1))
    x1 = jnp.concatenate([yc, yp], axis=1)
    dot = jnp.sum(x1 * x2, axis=1)
    denom = jnp.maximum(jnp.linalg.norm(x1, axis=1) * jnp.linalg.norm(x2, axis=1), 1e-8)
    cos = dot / denom
    per = jnp.where(sim > 0, 1.0 - cos, jnp.maximum(cos, 0.0))
    return phos_w * mse + phoc_w * ce + cos_w * jnp.mean(per)


if __name__ == "__main__":
    key = jax.random.PRNGKey(0)
    N, D_PHOS, D_PHOC = 8, 64, 128

    k = jax.random.split(key, 6)
    y = {
        'phos': jax.random.normal(k[0], (N, D_PHOS), jnp.float32),
        'phoc': jax.random.normal(k[1], (N, D_PHOC), jnp.float32),
    }
    t_phos = jax.random.uniform(k[2], (N, D_PHOS), jnp.float32)
    # soft-label (probability) targets for cross_entropy
    t_phoc = jax.nn.softmax(jax.random.normal(k[3], (N, D_PHOC), jnp.float32), axis=1)
    t_phosc = jax.random.normal(k[4], (N, D_PHOC + D_PHOS), jnp.float32)
    sim = jnp.where(jax.random.uniform(k[5], (N,)) > 0.5, 1.0, -1.0).astype(jnp.float32)
    targets = {'phos': t_phos, 'phoc': t_phoc, 'phosc': t_phosc, 'sim': sim}

    loss = phosc_cosine_loss(y, targets, phos_w=4.5, phoc_w=1.0, cos_w=1.0)
    loss = jax.block_until_ready(loss)
    ref = jax.block_until_ready(
        _reference_loss(y, targets, phos_w=4.5, phoc_w=1.0, cos_w=1.0))

    assert loss.shape == () and bool(jnp.isfinite(loss))
    assert jnp.allclose(loss, ref, rtol=1e-4, atol=1e-4), (loss, ref)
    print("KERNEL_OK")
</pallas_src>

<mosaic_0001>
module attributes {stable_mosaic.version = 11 : i64} {
  func.func @_phosc_loss_kernel(%arg0: i32, %arg1: memref<8x64xf32, #tpu.memory_space<vmem>>, %arg2: memref<8x64xf32, #tpu.memory_space<vmem>>, %arg3: memref<8x128xf32, #tpu.memory_space<vmem>>, %arg4: memref<8x128xf32, #tpu.memory_space<vmem>>, %arg5: memref<8x192xf32, #tpu.memory_space<vmem>>, %arg6: memref<8x1xf32, #tpu.memory_space<vmem>>, %arg7: memref<1x1xf32, #tpu.memory_space<smem>>, %arg8: memref<1xf32, #tpu.memory_space<smem>>) attributes {dimension_semantics = [#tpu.dimension_semantics<arbitrary>], iteration_bounds = array<i64: 1>, scalar_prefetch = 0 : i64, scratch_operands = 1 : i64, tpu.core_type = #tpu.core_type<tc>, window_params = [{transform_indices = @transform_0, window_bounds = array<i64: 8, 64>}, {transform_indices = @transform_1, window_bounds = array<i64: 8, 64>}, {transform_indices = @transform_2, window_bounds = array<i64: 8, 128>}, {transform_indices = @transform_3, window_bounds = array<i64: 8, 128>}, {transform_indices = @transform_4, window_bounds = array<i64: 8, 192>}, {transform_indices = @transform_5, window_bounds = array<i64: 8, 1>}, {transform_indices = @transform_6, window_bounds = array<i64: 1, 1>}]} {
    %c0_i32 = arith.constant 0 : i32
    %0 = arith.cmpi eq, %arg0, %c0_i32 : i32
    %1 = arith.extui %0 : i1 to i32
    %c0_i32_0 = arith.constant 0 : i32
    %2 = arith.cmpi ne, %1, %c0_i32_0 : i32
    scf.if %2 {
      %cst_39 = arith.constant 0.000000e+00 : f32
      %c0_40 = arith.constant 0 : index
      %89 = memref.load %arg8[%c0_40] : memref<1xf32, #tpu.memory_space<smem>>
      memref.store %cst_39, %arg8[%c0_40] : memref<1xf32, #tpu.memory_space<smem>>
    } else {
    }
    %c0 = arith.constant 0 : index
    %c0_1 = arith.constant 0 : index
    %3 = vector.load %arg1[%c0, %c0_1] : memref<8x64xf32, #tpu.memory_space<vmem>>, vector<8x64xf32>
    %c0_2 = arith.constant 0 : index
    %c0_3 = arith.constant 0 : index
    %4 = vector.load %arg2[%c0_2, %c0_3] : memref<8x64xf32, #tpu.memory_space<vmem>>, vector<8x64xf32>
    %c0_4 = arith.constant 0 : index
    %c0_5 = arith.constant 0 : index
    %5 = vector.load %arg3[%c0_4, %c0_5] : memref<8x128xf32, #tpu.memory_space<vmem>>, vector<8x128xf32>
    %c0_6 = arith.constant 0 : index
    %c0_7 = arith.constant 0 : index
    %6 = vector.load %arg4[%c0_6, %c0_7] : memref<8x128xf32, #tpu.memory_space<vmem>>, vector<8x128xf32>
    %c0_8 = arith.constant 0 : index
    %c0_9 = arith.constant 0 : index
    %7 = vector.load %arg5[%c0_8, %c0_9] : memref<8x192xf32, #tpu.memory_space<vmem>>, vector<8x128xf32>
    %c0_10 = arith.constant 0 : index
    %c128 = arith.constant 128 : index
    %8 = vector.load %arg5[%c0_10, %c128] : memref<8x192xf32, #tpu.memory_space<vmem>>, vector<8x64xf32>
    %c0_11 = arith.constant 0 : index
    %c0_12 = arith.constant 0 : index
    %9 = vector.load %arg6[%c0_11, %c0_12] : memref<8x1xf32, #tpu.memory_space<vmem>>, vector<8x1xf32>
    %10 = arith.subf %3, %4 : vector<8x64xf32>
    %11 = arith.mulf %10, %10 : vector<8x64xf32>
    %12 = vector.shape_cast %11 : vector<8x64xf32> to vector<1x8x64xf32>
    %cst = arith.constant dense<0.000000e+00> : vector<1xf32>
    %13 = vector.multi_reduction <add>, %12, %cst [1, 2] : vector<1x8x64xf32> to vector<1xf32>
    %14 = vector.shape_cast %13 : vector<1xf32> to vector<1x1x1xf32>
    %15 = vector.extract %14[0, 0, 0] : f32 from vector<1x1x1xf32>
    %cst_13 = arith.constant dense<0xFF800000> : vector<8xf32>
    %16 = vector.multi_reduction <maximumf>, %5, %cst_13 [1] : vector<8x128xf32> to vector<8xf32>
    %17 = vector.shape_cast %16 : vector<8xf32> to vector<8x1xf32>
    %18 = vector.broadcast %17 : vector<8x1xf32> to vector<8x128xf32>
    %19 = arith.subf %5, %18 : vector<8x128xf32>
    %20 = math.exp %19 : vector<8x128xf32>
    %cst_14 = arith.constant dense<0.000000e+00> : vector<8xf32>
    %21 = vector.multi_reduction <add>, %20, %cst_14 [1] : vector<8x128xf32> to vector<8xf32>
    %22 = vector.shape_cast %21 : vector<8xf32> to vector<8x1xf32>
    %23 = math.log %22 : vector<8x1xf32>
    %cst_15 = arith.constant dense<0.000000e+00> : vector<8xf32>
    %24 = vector.multi_reduction <add>, %6, %cst_15 [1] : vector<8x128xf32> to vector<8xf32>
    %25 = vector.shape_cast %24 : vector<8xf32> to vector<8x1xf32>
    %26 = arith.mulf %23, %25 : vector<8x1xf32>
    %27 = vector.shape_cast %26 : vector<8x1xf32> to vector<1x8x1xf32>
    %cst_16 = arith.constant dense<0.000000e+00> : vector<1xf32>
    %28 = vector.multi_reduction <add>, %27, %cst_16 [1, 2] : vector<1x8x1xf32> to vector<1xf32>
    %29 = vector.shape_cast %28 : vector<1xf32> to vector<1x1x1xf32>
    %30 = vector.extract %29[0, 0, 0] : f32 from vector<1x1x1xf32>
    %31 = arith.mulf %6, %19 : vector<8x128xf32>
    %32 = vector.shape_cast %31 : vector<8x128xf32> to vector<1x8x128xf32>
    %cst_17 = arith.constant dense<0.000000e+00> : vector<1xf32>
    %33 = vector.multi_reduction <add>, %32, %cst_17 [1, 2] : vector<1x8x128xf32> to vector<1xf32>
    %34 = vector.shape_cast %33 : vector<1xf32> to vector<1x1x1xf32>
    %35 = vector.extract %34[0, 0, 0] : f32 from vector<1x1x1xf32>
    %36 = arith.subf %30, %35 : f32
    %37 = arith.mulf %5, %7 : vector<8x128xf32>
    %cst_18 = arith.constant dense<0.000000e+00> : vector<8xf32>
    %38 = vector.multi_reduction <add>, %37, %cst_18 [1] : vector<8x128xf32> to vector<8xf32>
    %39 = vector.shape_cast %38 : vector<8xf32> to vector<8x1xf32>
    %40 = arith.mulf %3, %8 : vector<8x64xf32>
    %cst_19 = arith.constant dense<0.000000e+00> : vector<8xf32>
    %41 = vector.multi_reduction <add>, %40, %cst_19 [1] : vector<8x64xf32> to vector<8xf32>
    %42 = vector.shape_cast %41 : vector<8xf32> to vector<8x1xf32>
    %43 = arith.addf %39, %42 : vector<8x1xf32>
    %44 = arith.mulf %5, %5 : vector<8x128xf32>
    %cst_20 = arith.constant dense<0.000000e+00> : vector<8xf32>
    %45 = vector.multi_reduction <add>, %44, %cst_20 [1] : vector<8x128xf32> to vector<8xf32>
    %46 = vector.shape_cast %45 : vector<8xf32> to vector<8x1xf32>
    %47 = arith.mulf %3, %3 : vector<8x64xf32>
    %cst_21 = arith.constant dense<0.000000e+00> : vector<8xf32>
    %48 = vector.multi_reduction <add>, %47, %cst_21 [1] : vector<8x64xf32> to vector<8xf32>
    %49 = vector.shape_cast %48 : vector<8xf32> to vector<8x1xf32>
    %50 = arith.addf %46, %49 : vector<8x1xf32>
    %51 = arith.mulf %7, %7 : vector<8x128xf32>
    %cst_22 = arith.constant dense<0.000000e+00> : vector<8xf32>
    %52 = vector.multi_reduction <add>, %51, %cst_22 [1] : vector<8x128xf32> to vector<8xf32>
    %53 = vector.shape_cast %52 : vector<8xf32> to vector<8x1xf32>
    %54 = arith.mulf %8, %8 : vector<8x64xf32>
    %cst_23 = arith.constant dense<0.000000e+00> : vector<8xf32>
    %55 = vector.multi_reduction <add>, %54, %cst_23 [1] : vector<8x64xf32> to vector<8xf32>
    %56 = vector.shape_cast %55 : vector<8xf32> to vector<8x1xf32>
    %57 = arith.addf %53, %56 : vector<8x1xf32>
    %58 = math.sqrt %50 : vector<8x1xf32>
    %59 = math.sqrt %57 : vector<8x1xf32>
    %60 = arith.mulf %58, %59 : vector<8x1xf32>
    %cst_24 = arith.constant 9.99999993E-9 : f32
    %61 = vector.broadcast %cst_24 : f32 to vector<8x1xf32>
    %62 = arith.maximumf %60, %61 : vector<8x1xf32>
    %63 = arith.divf %43, %62 : vector<8x1xf32>
    %cst_25 = arith.constant 0.000000e+00 : f32
    %64 = vector.broadcast %cst_25 : f32 to vector<8x1xf32>
    %65 = arith.cmpf ogt, %9, %64 : vector<8x1xf32>
    %cst_26 = arith.constant 1.000000e+00 : f32
    %66 = vector.broadcast %cst_26 : f32 to vector<8x1xf32>
    %67 = arith.subf %66, %63 : vector<8x1xf32>
    %cst_27 = arith.constant 0.000000e+00 : f32
    %68 = vector.broadcast %cst_27 : f32 to vector<8x1xf32>
    %69 = arith.maximumf %63, %68 : vector<8x1xf32>
    %70 = arith.select %65, %67, %69 : vector<8x1xi1>, vector<8x1xf32>
    %71 = vector.shape_cast %70 : vector<8x1xf32> to vector<1x8x1xf32>
    %cst_28 = arith.constant dense<0.000000e+00> : vector<1xf32>
    %72 = vector.multi_reduction <add>, %71, %cst_28 [1, 2] : vector<1x8x1xf32> to vector<1xf32>
    %73 = vector.shape_cast %72 : vector<1xf32> to vector<1x1x1xf32>
    %74 = vector.extract %73[0, 0, 0] : f32 from vector<1x1x1xf32>
    %cst_29 = arith.constant 4.500000e+00 : f32
    %75 = arith.mulf %cst_29, %15 : f32
    %cst_30 = arith.constant 0.001953125 : f32
    %76 = arith.mulf %75, %cst_30 : f32
    %cst_31 = arith.constant 1.000000e+00 : f32
    %77 = arith.mulf %cst_31, %36 : f32
    %cst_32 = arith.constant 1.250000e-01 : f32
    %78 = arith.mulf %77, %cst_32 : f32
    %79 = arith.addf %76, %78 : f32
    %cst_33 = arith.constant 1.000000e+00 : f32
    %80 = arith.mulf %cst_33, %74 : f32
    %cst_34 = arith.constant 1.250000e-01 : f32
    %81 = arith.mulf %80, %cst_34 : f32
    %82 = arith.addf %79, %81 : f32
    %c0_35 = arith.constant 0 : index
    %83 = memref.load %arg8[%c0_35] : memref<1xf32, #tpu.memory_space<smem>>
    %84 = arith.addf %83, %82 : f32
    %c0_36 = arith.constant 0 : index
    %85 = memref.load %arg8[%c0_36] : memref<1xf32, #tpu.memory_space<smem>>
    memref.store %84, %arg8[%c0_36] : memref<1xf32, #tpu.memory_space<smem>>
    %c0_i32_37 = arith.constant 0 : i32
    %86 = arith.cmpi eq, %arg0, %c0_i32_37 : i32
    %87 = arith.extui %86 : i1 to i32
    %c0_i32_38 = arith.constant 0 : i32
    %88 = arith.cmpi ne, %87, %c0_i32_38 : i32
    scf.if %88 {
      %c0_39 = arith.constant 0 : index
      %89 = memref.load %arg8[%c0_39] : memref<1xf32, #tpu.memory_space<smem>>
      %c0_40 = arith.constant 0 : index
      %c0_41 = arith.constant 0 : index
      %90 = memref.load %arg7[%c0_40, %c0_41] : memref<1x1xf32, #tpu.memory_space<smem>>
      memref.store %89, %arg7[%c0_40, %c0_41] : memref<1x1xf32, #tpu.memory_space<smem>>
    } else {
    }
    return
  }
  func.func @transform_0(%arg0: i32) -> (i32, i32) {
    %c0_i32 = arith.constant 0 : i32
    %c0_i32_0 = arith.constant 0 : i32
    return %arg0, %c0_i32 : i32, i32
  }
  func.func @transform_1(%arg0: i32) -> (i32, i32) {
    %c0_i32 = arith.constant 0 : i32
    %c0_i32_0 = arith.constant 0 : i32
    return %arg0, %c0_i32 : i32, i32
  }
  func.func @transform_2(%arg0: i32) -> (i32, i32) {
    %c0_i32 = arith.constant 0 : i32
    %c0_i32_0 = arith.constant 0 : i32
    return %arg0, %c0_i32 : i32, i32
  }
  func.func @transform_3(%arg0: i32) -> (i32, i32) {
    %c0_i32 = arith.constant 0 : i32
    %c0_i32_0 = arith.constant 0 : i32
    return %arg0, %c0_i32 : i32, i32
  }
  func.func @transform_4(%arg0: i32) -> (i32, i32) {
    %c0_i32 = arith.constant 0 : i32
    %c0_i32_0 = arith.constant 0 : i32
    return %arg0, %c0_i32 : i32, i32
  }
  func.func @transform_5(%arg0: i32) -> (i32, i32) {
    %c0_i32 = arith.constant 0 : i32
    %c0_i32_0 = arith.constant 0 : i32
    return %arg0, %c0_i32 : i32, i32
  }
  func.func @transform_6(%arg0: i32) -> (i32, i32) {
    %c0_i32 = arith.constant 0 : i32
    %c0_i32_0 = arith.constant 0 : i32
    %c0_i32_1 = arith.constant 0 : i32
    return %c0_i32, %c0_i32_0 : i32, i32
  }
}

</mosaic_0001>

<llo_original>
// kernel: tpu_custom_call.1
$region0: #{tpu_custom_call.1}
  #allocation0 [shape = 'u32[]', space=smem, size = 0x4, offset = 0x4, fixed_abs, tag = 'smem constant byte address 0x4 - core index']
  #allocation1 [shape = 'u32[144,128]{1,0:T(1,128)}', space=vmem, size = 0x12000, scoped, tag = 'internal scratch']
  #allocation2 [shape = 'f32[1]{0:T(128)}', space=smem, size = 0x200, scoped, tag = 'scratch operand']
  %s0 = inlined_call_operand.hbm [shape: f32[8,64], index: 0, kind: input, shape index: {}]
  %s1 = inlined_call_operand.hbm [shape: f32[8,64], index: 1, kind: input, shape index: {}]
  %s2 = inlined_call_operand.hbm [shape: f32[8,128], index: 2, kind: input, shape index: {}]
  %s3 = inlined_call_operand.hbm [shape: f32[8,128], index: 3, kind: input, shape index: {}]
  %s4 = inlined_call_operand.vmem [shape: f32[8,192], index: 4, kind: input, shape index: {}]
  %s5 = inlined_call_operand.vmem [shape: f32[8,1], index: 5, kind: input, shape index: {}]
  %s6 = inlined_call_operand.hbm [shape: f32[1,1], index: 6, kind: output, shape index: {}]
  %s7 = sld [smem:[#allocation0]]
  $region58: #{tpu_custom_call.1} parent=0
    _
  %s9 = ssub.s32 1, %s7
  %s10 = scalar_select 0, %s9, %s7
  $region1: #{tpu_custom_call.1} parent=0
    #allocation3 [shape = 'u8[4096]{0}', space=vmem, size = 0x1000, scoped, tag = 'input window, operand 0, single buffered']
    #allocation4 [shape = 's32[1]{0}', space=sflag, size = 0x4, scoped, tag = 'scoped memory for tpu_custom_call.1']
    #allocation5 [shape = 's32[1]{0}', space=sflag, size = 0x4, scoped, tag = 'scoped memory for tpu_custom_call.1']
    #allocation6 [shape = 'u8[4096]{0}', space=vmem, size = 0x1000, scoped, tag = 'input window, operand 1, single buffered']
    #allocation7 [shape = 's32[1]{0}', space=sflag, size = 0x4, scoped, tag = 'scoped memory for tpu_custom_call.1']
    #allocation8 [shape = 'u8[4096]{0}', space=vmem, size = 0x1000, scoped, tag = 'input window, operand 2, single buffered']
    #allocation9 [shape = 'u8[4096]{0}', space=vmem, size = 0x1000, scoped, tag = 'input window, operand 3, single buffered']
    #allocation10 [shape = 's32[1]{0}', space=sflag, size = 0x4, scoped, tag = 'scoped memory for tpu_custom_call.1']
    #allocation11 [shape = 'u8[512]{0}', space=smem, size = 0x200, scoped, tag = 'output window, operand 0, single buffered']
    %11 = vsyncpa [#allocation4], 0
    %12 = vsyncpa [#allocation7], 0
    %13 = vsyncpa [#allocation10], 0
    %14 = vsyncpa [#allocation5], 0
    // Predicated region
    $region2: #{tpu_custom_call.1} parent=1 // pred_check
      _
    $region3: #{tpu_custom_call.1} parent=1 // pred_check_branch
      %16 = sbr.rel (0) target = $region5
    $region4: #{tpu_custom_call.1} parent=1 // pred_region
      %s18 = ssub.s32 128, 128
      %19 = vsyncadd [#allocation4], %s18
      %s21 = sshll.u32 [#allocation3], 4
      %s22 = int_to_ptr.vmem [resolvable:$true] %s21
      %24 = dma.hbm_to_vmem [thread:$0]  %s0, 128, %s22, [#allocation4]
    $region5: #{tpu_custom_call.1} parent=1 // pred_fallthru
      _
    // Predicated region
    $region6: #{tpu_custom_call.1} parent=1 // pred_check
      _
    $region7: #{tpu_custom_call.1} parent=1 // pred_check_branch
      %26 = sbr.rel (0) target = $region9
    $region8: #{tpu_custom_call.1} parent=1 // pred_region
      %s28 = ssub.s32 128, 128
      %29 = vsyncadd [#allocation7], %s28
      %s31 = sshll.u32 [#allocation6], 4
      %s32 = int_to_ptr.vmem [resolvable:$true] %s31
      %34 = dma.hbm_to_vmem [thread:$0]  %s1, 128, %s32, [#allocation7]
    $region9: #{tpu_custom_call.1} parent=1 // pred_fallthru
      _
    // Predicated region
    $region10: #{tpu_custom_call.1} parent=1 // pred_check
      _
    $region11: #{tpu_custom_call.1} parent=1 // pred_check_branch
      %36 = sbr.rel (0) target = $region13
    $region12: #{tpu_custom_call.1} parent=1 // pred_region
      %s38 = ssub.s32 128, 128
      %39 = vsyncadd [#allocation7], %s38
      %s41 = sshll.u32 [#allocation8], 4
      %s42 = int_to_ptr.vmem [resolvable:$true] %s41
      %44 = dma.hbm_to_vmem [thread:$0]  %s2, 128, %s42, [#allocation7]
    $region13: #{tpu_custom_call.1} parent=1 // pred_fallthru
      _
    // Predicated region
    $region14: #{tpu_custom_call.1} parent=1 // pred_check
      _
    $region15: #{tpu_custom_call.1} parent=1 // pred_check_branch
      %46 = sbr.rel (0) target = $region17
    $region16: #{tpu_custom_call.1} parent=1 // pred_region
      %s48 = ssub.s32 128, 128
      %49 = vsyncadd [#allocation10], %s48
      %s51 = sshll.u32 [#allocation9], 4
      %s52 = int_to_ptr.vmem [resolvable:$true] %s51
      %54 = dma.hbm_to_vmem [thread:$0]  %s3, 128, %s52, [#allocation10]
    $region17: #{tpu_custom_call.1} parent=1 // pred_fallthru
      _
    // Predicated region
    $region18: #{tpu_custom_call.1} parent=1 // pred_check
      _
    $region19: #{tpu_custom_call.1} parent=1 // pred_check_branch
      %56 = sbr.rel (0) target = $region21
    $region20: #{tpu_custom_call.1} parent=1 // pred_region
      _
    $region21: #{tpu_custom_call.1} parent=1 // pred_fallthru
      _
    // Predicated region
    $region22: #{tpu_custom_call.1} parent=1 // pred_check
      _
    $region23: #{tpu_custom_call.1} parent=1 // pred_check_branch
      %58 = sbr.rel (0) target = $region25
    $region24: #{tpu_custom_call.1} parent=1 // pred_region
      _
    $region25: #{tpu_custom_call.1} parent=1 // pred_fallthru
      _
    // Predicated region
    $region26: #{tpu_custom_call.1} parent=1 // pred_check
      _
    $region27: #{tpu_custom_call.1} parent=1 // pred_check_branch
      %60 = sbr.rel (0) target = $region29
    $region28: #{tpu_custom_call.1} parent=1 // pred_region
      %61 = dma.done [#allocation4], 128
    $region29: #{tpu_custom_call.1} parent=1 // pred_fallthru
      _
    // Predicated region
    $region30: #{tpu_custom_call.1} parent=1 // pred_check
      _
    $region31: #{tpu_custom_call.1} parent=1 // pred_check_branch
      %63 = sbr.rel (0) target = $region33
    $region32: #{tpu_custom_call.1} parent=1 // pred_region
      %64 = dma.done [#allocation7], 128
    $region33: #{tpu_custom_call.1} parent=1 // pred_fallthru
      _
    // Predicated region
    $region34: #{tpu_custom_call.1} parent=1 // pred_check
      _
    $region35: #{tpu_custom_call.1} parent=1 // pred_check_branch
      %66 = sbr.rel (0) target = $region37
    $region36: #{tpu_custom_call.1} parent=1 // pred_region
      %67 = dma.done [#allocation7], 128
    $region37: #{tpu_custom_call.1} parent=1 // pred_fallthru
      _
    // Predicated region
    $region38: #{tpu_custom_call.1} parent=1 // pred_check
      _
    $region39: #{tpu_custom_call.1} parent=1 // pred_check_branch
      %69 = sbr.rel (0) target = $region41
    $region40: #{tpu_custom_call.1} parent=1 // pred_region
      %70 = dma.done [#allocation10], 128
    $region41: #{tpu_custom_call.1} parent=1 // pred_fallthru
      _
    %p71 = scmp.eq.s32.totalorder 0, 0
    // Predicated region
    $region42: #{tpu_custom_call.1} parent=1 // pred_check
      %p72 = pneg %p71
    $region43: #{tpu_custom_call.1} parent=1 // pred_check_branch
      %74 = sbr.rel (%p72) target = $region45
    $region44: #{tpu_custom_call.1} parent=1 // pred_region
      %s75 = scalar_lea.smem [#allocation2], 0
      %76 = sst [smem:[%s75]] 0.0
    $region45: #{tpu_custom_call.1} parent=1 // pred_fallthru
      _
    %v77 = vld [vmem:[#allocation3] sm:$0xff]
    %v78 = vld [vmem:[#allocation6] sm:$0xff]
    %v79 = vld [vmem:[#allocation8] sm:$0xff]
    %v80 = vld [vmem:[#allocation9] sm:$0xff]
    %v81 = vld [vmem:[%s4] sm:$0xff]
    %v82 = vld [vmem:[%s4 + $0x8] sm:$0xff]
    %v83 = vld [vmem:[%s5] sm:$0xff]
    %v84 = vsub.f32 %v77, %v78
    %v85 = vmul.f32 %v84, %v84
    %vm86 = vcmask 523264
    %v87 = vsel %vm86, %v85, 0.0
    %88 = vadd.xlane.f32.xlu0 %v87
    %v89 = vpop.xlane.xlu0 %88
    %v90 = vrot.slane %v89, 4
    %v91 = vadd.f32 %v89, %v90
    %v92 = vrot.slane %v91, 2
    %v93 = vadd.f32 %v91, %v92
    %v94 = vrot.slane %v93, 1
    %v95 = vadd.f32 %v93, %v94
    %s96 = vtos %v95
    %97 = vmax.xlane.f32.xlu0 %v79
    %v98 = vpop.xlane.xlu0 %97
    %v99 = vsub.f32 %v79, %v98
    %v100 = vmul.f32 %v99, 1.442695
    %v101 = vpow.pop %v100
    %102 = vadd.xlane.f32.xlu0 %v101
    %v103 = vpop.xlane.xlu0 %102
    %v104 = vlog2.pop %v103
    %v105 = vmul.f32 %v104, 0.6931472
    %106 = vadd.xlane.f32.xlu0 %v80
    %v107 = vpop.xlane.xlu0 %106
    %v108 = vmul.f32 %v105, %v107
    %vm109 = vcmask 7168
    %v110 = vsel %vm109, %v108, 0.0
    %111 = vadd.xlane.f32.xlu0 %v110
    %v112 = vpop.xlane.xlu0 %111
    %v113 = vrot.slane %v112, 4
    %v114 = vadd.f32 %v112, %v113
    %v115 = vrot.slane %v114, 2
    %v116 = vadd.f32 %v114, %v115
    %v117 = vrot.slane %v116, 1
    %v118 = vadd.f32 %v116, %v117
    %s119 = vtos %v118
    %v120 = vmul.f32 %v80, %v99
    %121 = vadd.xlane.f32.xlu0 %v120
    %v122 = vpop.xlane.xlu0 %121
    %v123 = vrot.slane %v122, 4
    %v124 = vadd.f32 %v122, %v123
    %v125 = vrot.slane %v124, 2
    %v126 = vadd.f32 %v124, %v125
    %v127 = vrot.slane %v126, 1
    %v128 = vadd.f32 %v126, %v127
    %s129 = vtos %v128
    %s130 = ssub.f32 %s119, %s129
    %v131 = vmul.f32 %v79, %v81
    %132 = vadd.xlane.f32.xlu0 %v131
    %v133 = vpop.xlane.xlu0 %132
    %v134 = vmul.f32 %v77, %v82
    %v135 = vsel %vm86, %v134, 0.0
    %136 = vadd.xlane.f32.xlu0 %v135
    %v137 = vpop.xlane.xlu0 %136
    %v138 = vadd.f32 %v133, %v137
    %v139 = vmul.f32 %v79, %v79
    %140 = vadd.xlane.f32.xlu0 %v139
    %v141 = vpop.xlane.xlu0 %140
    %v142 = vmul.f32 %v77, %v77
    %v143 = vsel %vm86, %v142, 0.0
    %144 = vadd.xlane.f32.xlu0 %v143
    %v145 = vpop.xlane.xlu0 %144
    %v146 = vadd.f32 %v141, %v145
    %v147 = vmul.f32 %v81, %v81
    %148 = vadd.xlane.f32.xlu0 %v147
    %v149 = vpop.xlane.xlu0 %148
    %v150 = vmul.f32 %v82, %v82
    %v151 = vsel %vm86, %v150, 0.0
    %152 = vadd.xlane.f32.xlu0 %v151
    %v153 = vpop.xlane.xlu0 %152
    %v154 = vadd.f32 %v149, %v153
    %v155 = vrsqrt.pop %v146
    %v156 = vmul.f32 %v146, %v155
    %vm157 = vcmp.eq.f32.partialorder %v146, inf
    %v158 = vsel %vm157, %v146, %v156
    %vm159 = vcmp.eq.f32.partialorder %v146, 0.0
    %v160 = vand.u32 %v146, 2147483648
    %v161 = vsel %vm159, %v160, %v158
    %v162 = vrsqrt.pop %v154
    %v163 = vmul.f32 %v154, %v162
    %vm164 = vcmp.eq.f32.partialorder %v154, inf
    %v165 = vsel %vm164, %v154, %v163
    %vm166 = vcmp.eq.f32.partialorder %v154, 0.0
    %v167 = vand.u32 %v154, 2147483648
    %v168 = vsel %vm166, %v167, %v165
    %v169 = vmul.f32 %v161, %v168
    %v170 = vmax.f32 %v169, 1e-08
    %v171 = vrcp.pop %v170
    %v172 = vmul.f32 %v138, %v171
    %vm173 = vcmp.gt.f32.partialorder %v83, 0.0
    %v174 = vsub.f32 1.0, %v172
    %v175 = vmax.f32 %v172, 0.0
    %v176 = vsel %vm173, %v174, %v175
    %v177 = vsel %vm109, %v176, 0.0
    %178 = vadd.xlane.f32.xlu0 %v177
    %v179 = vpop.xlane.xlu0 %178
    %v180 = vrot.slane %v179, 4
    %v181 = vadd.f32 %v179, %v180
    %v182 = vrot.slane %v181, 2
    %v183 = vadd.f32 %v181, %v182
    %v184 = vrot.slane %v183, 1
    %v185 = vadd.f32 %v183, %v184
    %s186 = vtos %v185
    %s187 = smul.f32 %s96, 4.5
    %s188 = smul.f32 %s187, 0.001953125
    %s189 = smul.f32 %s130, 0.125
    %s190 = sadd.f32 %s188, %s189
    %s191 = smul.f32 %s186, 0.125
    %s192 = sadd.f32 %s190, %s191
    %s193 = sld [smem:[#allocation2]]
    %s194 = sadd.f32 %s193, %s192
    %s195 = scalar_lea.smem [#allocation2], 0
    %196 = sst [smem:[%s195]] %s194
    // Predicated region
    $region46: #{tpu_custom_call.1} parent=1 // pred_check
      %p197 = pneg %p71
    $region47: #{tpu_custom_call.1} parent=1 // pred_check_branch
      %199 = sbr.rel (%p197) target = $region49
    $region48: #{tpu_custom_call.1} parent=1 // pred_region
      %s200 = sld [smem:[#allocation2]]
      %s201 = scalar_lea.smem [#allocation11], 0
      %202 = sst [smem:[%s201]] %s200
    $region49: #{tpu_custom_call.1} parent=1 // pred_fallthru
      _
    // Predicated region
    $region50: #{tpu_custom_call.1} parent=1 // pred_check
      _
    $region51: #{tpu_custom_call.1} parent=1 // pred_check_branch
      %204 = sbr.rel (0) target = $region53
    $region52: #{tpu_custom_call.1} parent=1 // pred_region
      %s206 = ssub.s32 16, 16
      %207 = vsyncadd [#allocation5], %s206
      %210 = dma.smem_to_hbm [#allocation11], 16, %s6, [#allocation5]
    $region53: #{tpu_custom_call.1} parent=1 // pred_fallthru
      _
    // Predicated region
    $region54: #{tpu_custom_call.1} parent=1 // pred_check
      _
    $region55: #{tpu_custom_call.1} parent=1 // pred_check_branch
      %212 = sbr.rel (0) target = $region57
    $region56: #{tpu_custom_call.1} parent=1 // pred_region
      %213 = dma.done [#allocation5], 16
    $region57: #{tpu_custom_call.1} parent=1 // pred_fallthru
      _
    %214 = sfence
    %215 = vsyncpa [#allocation4], 1
    %216 = vsyncpa [#allocation7], 1
    %217 = vsyncpa [#allocation10], 1
    %218 = vsyncpa [#allocation5], 1

</llo_original>
